<compile_context>
chip_gen: v7x
topology: tpu7x:2x2x1
jax: 0.10.0
libtpu: 0.0.40
codegen_flags: <defaults>
</compile_context>

<pallas_src>
import jax
import jax.numpy as jnp
from jax.experimental import pallas as pl
from jax.experimental.pallas import tpu as pltpu


# ---------------------------------------------------------------------------
# Helpers: rounding, VMEM accounting, tile selection
# ---------------------------------------------------------------------------
_VMEM_BUDGET = 24 * 1024 * 1024      # conservative: fits default scoped VMEM on v6e/v7x
_GATHER_V_THRESHOLD = 2048           # one-hot -> DMA row-gather crossover (earliest on v5e)
_TINY_F = 8                          # below this, skip the MXU for the linear path


def _round_up(x, m):
    return ((x + m - 1) // m) * m


def _lanes(n):
    """VMEM lane footprint of a last dim (padded to 128 lanes physically)."""
    return _round_up(max(n, 1), 128)


def _pick_tile_n(n, per_row_bytes, resident_bytes, budget=_VMEM_BUDGET):
    """Largest multiple-of-8 row tile whose estimated VMEM footprint fits `budget`."""
    avail = max(budget - resident_bytes, 8 * per_row_bytes)
    t = avail // max(per_row_bytes, 1)
    t = max(8, min(1024, (t // 8) * 8))
    n_ceil = _round_up(max(n, 1), 8)
    t = min(t, n_ceil)
    # Ensure >= 2 grid steps when there is enough work, so the "parallel" axis can
    # shard across v7x's 2 TensorCores (per-step overhead is only ~0.35us).
    if n_ceil >= 16:
        t = min(t, _round_up((n_ceil + 1) // 2, 8))
    return int(max(t, 8))


def _vmem_limit(need_bytes):
    """Scoped-VMEM limit: explicit estimate + margin, never below 32 MiB (>= every
    generation's default) and never above 48 MiB (headroom under v7x's 64 MiB)."""
    return int(min(max(int(need_bytes) + (2 << 20), 32 << 20), 48 << 20))


# ---------------------------------------------------------------------------
# Kernel 1: Linear  (out = x @ W + b); tiny-F path uses VPU broadcast-FMA
# ---------------------------------------------------------------------------
def _linear_kernel(x_ref, w_ref, b_ref, o_ref):
    x = x_ref[...]            # (tile_n, F)  f32
    w = w_ref[...]            # (F, H)       f32, VMEM-resident
    b = b_ref[...]            # (1, H)       f32, VMEM-resident
    f_dim = x.shape[1]
    if f_dim <= _TINY_F:
        # K is tiny -> MXU would run at <2% utilization; broadcast-FMA on the VPU instead.
        acc = jnp.broadcast_to(b, o_ref.shape).astype(jnp.float32)
        for f in range(f_dim):                       # static unroll
            acc = acc + x[:, f:f + 1] * w[f:f + 1, :]
    else:
        acc = jnp.dot(x, w, preferred_element_type=jnp.float32) + b
    o_ref[...] = acc.astype(o_ref.dtype)


def linear_forward(x, w, b):
    """x: (N, F), w: (F, H), b: (1, H) -> (N, H) f32."""
    N, F = x.shape
    _, H = w.shape
    Hl, Fl = _lanes(H), _lanes(F)

    resident = 2 * 4 * (_round_up(F, 8) * Hl + 8 * Hl)       # W + b, double-buffered
    per_row = 4 * (2 * Fl + 3 * Hl)                          # x tile x2 + out tile x2 + acc
    tile_n = _pick_tile_n(N, per_row, resident)
    N_pad = _round_up(N, tile_n)

    x32 = x.astype(jnp.float32)
    if N_pad != N:
        x32 = jnp.pad(x32, ((0, N_pad - N), (0, 0)))
    b2d = b.reshape(1, H).astype(jnp.float32)

    out = pl.pallas_call(
        _linear_kernel,
        out_shape=jax.ShapeDtypeStruct((N_pad, H), jnp.float32),
        grid_spec=pltpu.PrefetchScalarGridSpec(
            num_scalar_prefetch=0,
            grid=(N_pad // tile_n,),
            in_specs=[
                pl.BlockSpec((tile_n, F), lambda i: (i, 0)),   # streamed over N
                pl.BlockSpec((F, H), lambda i: (0, 0)),        # resident
                pl.BlockSpec((1, H), lambda i: (0, 0)),        # resident
            ],
            out_specs=pl.BlockSpec((tile_n, H), lambda i: (i, 0)),
        ),
        compiler_params=pltpu.CompilerParams(
            dimension_semantics=("parallel",),
            vmem_limit_bytes=_vmem_limit(resident + tile_n * per_row)),
        cost_estimate=pl.CostEstimate(
            flops=2 * N_pad * F * H, transcendentals=0,
            bytes_accessed=4 * (N_pad * F + F * H + H + N_pad * H)),
    )(x32, w.astype(jnp.float32), b2d)
    return out if N_pad == N else out[:N]


# ---------------------------------------------------------------------------
# Kernel 2a: Embedding lookup via lane-dense one-hot @ table on the MXU (small V)
# ---------------------------------------------------------------------------
def _embedding_onehot_kernel(idx_ref, tbl_ref, o_ref):
    idx = idx_ref[...]                                           # (tile_n, 1) int32
    tn = idx.shape[0]
    v_pad = tbl_ref.shape[0]
    cols = jax.lax.broadcasted_iota(jnp.int32, (tn, v_pad), 1)   # (tile_n, V_pad)
    onehot = (cols == idx).astype(jnp.float32)                   # exact 0/1 -> exact gather
    o_ref[...] = jnp.dot(onehot, tbl_ref[...],
                         preferred_element_type=jnp.float32).astype(o_ref.dtype)


# ---------------------------------------------------------------------------
# Kernel 2b: Embedding lookup via per-row DMA gather (large V; table stays in HBM)
# ---------------------------------------------------------------------------
def _embedding_gather_kernel(idx_ref, tbl_hbm, o_ref, sems):
    i = pl.program_id(0)
    tn = o_ref.shape[0]

    def row_copy(r, slot):
        g = idx_ref[i * tn + r]                 # scalar read from SMEM-prefetched indices
        return pltpu.make_async_copy(
            tbl_hbm.at[pl.ds(g, 1), :],         # one table row in HBM
            o_ref.at[pl.ds(r, 1), :],           # straight into the output VMEM block
            sems.at[slot])

    row_copy(0, 0).start()                      # prime the 2-deep pipeline

    def body(r, carry):
        slot = r & 1

        @pl.when(r + 1 < tn)
        def _():
            row_copy(r + 1, 1 - slot).start()   # prefetch next row

        row_copy(r, slot).wait()                # consume current row
        return carry

    jax.lax.fori_loop(0, tn, body, 0)


def embedding_forward(indices, table_padded):
    """indices: (N,) int, table_padded: (V_pad, H) f32 (pre-padded at init) -> (N, H)."""
    N = indices.shape[0]
    V_pad, H = table_padded.shape
    Hl = _lanes(H)
    idx = indices.astype(jnp.int32)

    onehot_resident = 2 * V_pad * Hl * 4                      # table, double-buffered
    onehot_per_row = 4 * (2 * 128 + 3 * Hl + V_pad)           # idx x2 + out x2 + acc + onehot
    use_gather = (V_pad >= _GATHER_V_THRESHOLD
                  or onehot_resident + 8 * onehot_per_row > _VMEM_BUDGET)

    if use_gather:
        # O(N*H) DMA row-gather: avoids the O(N*V*H) one-hot flops (binding on v5e's MXU)
        # and keeps the table out of VMEM entirely (binding on v7x's 64 MiB VMEM).
        # TODO(synk): indices land in SMEM via scalar prefetch; for very large N, chunk them.
        per_row = 4 * 3 * Hl
        tile_n = _pick_tile_n(N, per_row, 0)
        N_pad = _round_up(N, tile_n)
        if N_pad != N:
            idx = jnp.pad(idx, (0, N_pad - N))
        out = pl.pallas_call(
            _embedding_gather_kernel,
            out_shape=jax.ShapeDtypeStruct((N_pad, H), jnp.float32),
            grid_spec=pltpu.PrefetchScalarGridSpec(
                num_scalar_prefetch=1,                          # indices -> SMEM
                grid=(N_pad // tile_n,),
                in_specs=[pl.BlockSpec(memory_space=pl.ANY)],   # table stays in HBM
                out_specs=pl.BlockSpec((tile_n, H), lambda i, idx_sref: (i, 0)),
                scratch_shapes=[pltpu.SemaphoreType.DMA((2,))],
            ),
            compiler_params=pltpu.CompilerParams(
                dimension_semantics=("arbitrary",),
                vmem_limit_bytes=_vmem_limit(tile_n * per_row)),
            cost_estimate=pl.CostEstimate(
                flops=2 * N_pad * H, transcendentals=0,
                bytes_accessed=4 * (N_pad + 2 * N_pad * H)),
        )(idx, table_padded)
    else:
        tile_n = _pick_tile_n(N, onehot_per_row, onehot_resident)
        N_pad = _round_up(N, tile_n)
        idx2d = idx.reshape(N, 1)
        if N_pad != N:
            idx2d = jnp.pad(idx2d, ((0, N_pad - N), (0, 0)))
        out = pl.pallas_call(
            _embedding_onehot_kernel,
            out_shape=jax.ShapeDtypeStruct((N_pad, H), jnp.float32),
            grid_spec=pltpu.PrefetchScalarGridSpec(
                num_scalar_prefetch=0,
                grid=(N_pad // tile_n,),
                in_specs=[
                    pl.BlockSpec((tile_n, 1), lambda i: (i, 0)),    # streamed over N
                    pl.BlockSpec((V_pad, H), lambda i: (0, 0)),     # table VMEM-resident
                ],
                out_specs=pl.BlockSpec((tile_n, H), lambda i: (i, 0)),
            ),
            compiler_params=pltpu.CompilerParams(
                dimension_semantics=("parallel",),
                vmem_limit_bytes=_vmem_limit(onehot_resident + tile_n * onehot_per_row)),
            cost_estimate=pl.CostEstimate(
                flops=2 * N_pad * H, transcendentals=0,             # gather-equivalent cost
                bytes_accessed=4 * (N_pad + V_pad * H + N_pad * H)),
        )(idx2d, table_padded)

    return out if N_pad == N else out[:N]


# jit the forwards so the remaining pad/astype/slice ops fuse with neighbouring ops.
_embedding_forward_jit = jax.jit(embedding_forward)
_linear_forward_jit = jax.jit(linear_forward)


# ---------------------------------------------------------------------------
# EdgeEmbedding wrapper (mirrors the PyTorch module's __init__ / forward)
# ---------------------------------------------------------------------------
class EdgeEmbedding:
    def __init__(self, num_edge_features, max_value, hidden_dim, key):
        self.num_edge_features = num_edge_features
        if num_edge_features == 1:
            # nn.Embedding(max_value, hidden_dim, padding_idx=max_value-1):
            # weights ~ N(0,1), padding row zeroed.
            w = jax.random.normal(key, (max_value, hidden_dim), dtype=jnp.float32)
            w = w.at[max_value - 1].set(0.0)
            self.table = w
            # Pre-pad V ONCE at init (128-multiple: lane-dense one-hot compare / MXU K dim,
            # and harmless zero rows for the gather path).  H is deliberately left unpadded
            # so the kernel writes (N, H) directly and no post-kernel H slice is needed.
            v_pad = _round_up(max_value, 128)
            self._table_padded = jnp.pad(w, ((0, v_pad - max_value), (0, 0)))
        else:
            # nn.Linear(num_edge_features, hidden_dim): U(-k, k), k = 1/sqrt(fan_in);
            # W stored as (F, H) == torch weight (H, F) transposed.
            kw, kb = jax.random.split(key)
            bound = 1.0 / (num_edge_features ** 0.5)
            self.w = jax.random.uniform(kw, (num_edge_features, hidden_dim),
                                        minval=-bound, maxval=bound, dtype=jnp.float32)
            self.b = jax.random.uniform(kb, (1, hidden_dim),
                                        minval=-bound, maxval=bound, dtype=jnp.float32)

    def __call__(self, x):
        if self.num_edge_features == 1:
            # NOTE: out-of-range / negative indices produce zero rows instead of raising
            # like nn.Embedding (inputs are assumed validated upstream).
            return _embedding_forward_jit(x, self._table_padded)
        return _linear_forward_jit(x, self.w, self.b)


if __name__ == "__main__":
    key = jax.random.PRNGKey(0)
    k_emb, k_emb_big, k_lin, k_x, k_idx, k_idx_big = jax.random.split(key, 6)

    # --- Embedding branch, small vocab (one-hot MXU gather path) ---
    max_value, hidden_dim, n_edges = 16, 32, 8
    emb_mod = EdgeEmbedding(num_edge_features=1, max_value=max_value,
                            hidden_dim=hidden_dim, key=k_emb)
    idx = jax.random.randint(k_idx, (n_edges,), 0, max_value, dtype=jnp.int32)
    out_emb = emb_mod(idx)
    jax.block_until_ready(out_emb)
    ref_emb = emb_mod.table[idx]
    assert out_emb.shape == (n_edges, hidden_dim)
    assert jnp.allclose(out_emb, ref_emb, atol=1e-5), "embedding (one-hot path) mismatch"

    # --- Embedding branch, large vocab (per-row DMA gather path, padded N, 2 grid steps) ---
    big_vocab, n_big = 4096, 10
    emb_big = EdgeEmbedding(num_edge_features=1, max_value=big_vocab,
                            hidden_dim=hidden_dim, key=k_emb_big)
    idx_big = jax.random.randint(k_idx_big, (n_big,), 0, big_vocab, dtype=jnp.int32)
    out_big = emb_big(idx_big)
    jax.block_until_ready(out_big)
    ref_big = emb_big.table[idx_big]
    assert out_big.shape == (n_big, hidden_dim)
    assert jnp.allclose(out_big, ref_big, atol=1e-5), "embedding (gather path) mismatch"

    # --- Linear branch (num_edge_features > 1, tiny-F VPU path) ---
    num_edge_features = 4
    lin_mod = EdgeEmbedding(num_edge_features=num_edge_features,
                            max_value=max_value, hidden_dim=hidden_dim, key=k_lin)
    x = jax.random.normal(k_x, (n_edges, num_edge_features), dtype=jnp.float32)
    out_lin = lin_mod(x)
    jax.block_until_ready(out_lin)
    ref_lin = x @ lin_mod.w + lin_mod.b
    assert out_lin.shape == (n_edges, hidden_dim)
    assert jnp.allclose(out_lin, ref_lin, atol=1e-5), "linear mismatch"

    print("KERNEL_OK")
</pallas_src>

<mosaic_0001>
module attributes {stable_mosaic.version = 11 : i64} {
  func.func @_embedding_onehot_kernel(%arg0: i32, %arg1: memref<8x1xi32, #tpu.memory_space<vmem>>, %arg2: memref<128x32xf32, #tpu.memory_space<vmem>>, %arg3: memref<8x32xf32, #tpu.memory_space<vmem>>) attributes {dimension_semantics = [#tpu.dimension_semantics<parallel>], iteration_bounds = array<i64: 1>, scalar_prefetch = 0 : i64, scratch_operands = 0 : i64, tpu.core_type = #tpu.core_type<tc>, window_params = [{transform_indices = @transform_0, window_bounds = array<i64: 8, 1>}, {pipeline_mode = #tpu.pipeline_mode<synchronous>, transform_indices = @transform_1, window_bounds = array<i64: 128, 32>}, {transform_indices = @transform_2, window_bounds = array<i64: 8, 32>}]} {
    %c0 = arith.constant 0 : index
    %c0_0 = arith.constant 0 : index
    %0 = vector.load %arg1[%c0, %c0_0] : memref<8x1xi32, #tpu.memory_space<vmem>>, vector<8x1xi32>
    %1 = tpu.iota {dimensions = array<i32: 1>} : vector<8x128xi32>
    %2 = vector.broadcast %0 : vector<8x1xi32> to vector<8x128xi32>
    %3 = arith.cmpi eq, %1, %2 : vector<8x128xi32>
    %4 = arith.extui %3 : vector<8x128xi1> to vector<8x128xi32>
    %5 = arith.sitofp %4 : vector<8x128xi32> to vector<8x128xf32>
    %c0_1 = arith.constant 0 : index
    %c0_2 = arith.constant 0 : index
    %6 = vector.load %arg2[%c0_1, %c0_2] : memref<128x32xf32, #tpu.memory_space<vmem>>, vector<128x32xf32>
    %cst = arith.constant dense<0.000000e+00> : vector<8x32xf32>
    %7 = tpu.matmul %5, %6, %cst {dimension_numbers = #tpu.dot_dimension_numbers<[1], [0], [0], [1], [0, 0, 1, 1], [], []>} : vector<8x128xf32>, vector<128x32xf32>, vector<8x32xf32> -> vector<8x32xf32>
    %c0_3 = arith.constant 0 : index
    %c0_4 = arith.constant 0 : index
    %8 = vector.load %arg3[%c0_3, %c0_4] : memref<8x32xf32, #tpu.memory_space<vmem>>, vector<8x32xf32>
    tpu.vector_store %arg3[%c0_3, %c0_4], %7 {strides = array<i32>} : memref<8x32xf32, #tpu.memory_space<vmem>>, vector<8x32xf32>,
    return
  }
  func.func @transform_0(%arg0: i32) -> (i32, i32) {
    %c0_i32 = arith.constant 0 : i32
    %c0_i32_0 = arith.constant 0 : i32
    return %arg0, %c0_i32 : i32, i32
  }
  func.func @transform_1(%arg0: i32) -> (i32, i32) {
    %c0_i32 = arith.constant 0 : i32
    %c0_i32_0 = arith.constant 0 : i32
    %c0_i32_1 = arith.constant 0 : i32
    return %c0_i32, %c0_i32_0 : i32, i32
  }
  func.func @transform_2(%arg0: i32) -> (i32, i32) {
    %c0_i32 = arith.constant 0 : i32
    %c0_i32_0 = arith.constant 0 : i32
    return %arg0, %c0_i32 : i32, i32
  }
}

</mosaic_0001>

<llo_original>
// kernel: embedding_forward.1
$region0: #{embedding_forward.1}
  #allocation0 [shape = 'u32[]', space=smem, size = 0x4, offset = 0x4, fixed_abs, tag = 'smem constant byte address 0x4 - core index']
  #allocation1 [shape = 'u32[144,128]{1,0:T(1,128)}', space=vmem, size = 0x12000, scoped, tag = 'internal scratch']
  %s0 = inlined_call_operand.vmem [shape: s32[8,1], index: 0, kind: input, shape index: {}]
  %s1 = inlined_call_operand.vmem [shape: f32[128,32], index: 1, kind: input, shape index: {}]
  %s2 = inlined_call_operand.hbm [shape: f32[8,32], index: 2, kind: output, shape index: {}]
  %s3 = sld [smem:[#allocation0]]
  $region18: #{embedding_forward.1} parent=0
    _
  %s5 = ssub.s32 1, %s3
  %s6 = scalar_select 0, %s5, %s3
  $region1: #{embedding_forward.1} parent=0
    #allocation2 [shape = 'u8[4096]{0}', space=vmem, size = 0x1000, scoped, tag = 'output window, operand 0, single buffered']
    #allocation3 [shape = 's32[1]{0}', space=sflag, size = 0x4, scoped, tag = 'scoped memory for embedding_forward.1']
    %7 = vsyncpa [#allocation3], 0
    // Predicated region
    $region2: #{embedding_forward.1} parent=1 // pred_check
      _
    $region3: #{embedding_forward.1} parent=1 // pred_check_branch
      %9 = sbr.rel (0) target = $region5
    $region4: #{embedding_forward.1} parent=1 // pred_region
      _
    $region5: #{embedding_forward.1} parent=1 // pred_fallthru
      _
    // Predicated region
    $region6: #{embedding_forward.1} parent=1 // pred_check
      _
    $region7: #{embedding_forward.1} parent=1 // pred_check_branch
      %11 = sbr.rel (0) target = $region9
    $region8: #{embedding_forward.1} parent=1 // pred_region
      _
    $region9: #{embedding_forward.1} parent=1 // pred_fallthru
      _
    %v12 = vld [vmem:[%s0] sm:$0xff]
    %v13 = vlaneseq
    %v14 = vand.u32 %v13, 127
    %15 = vset.pattern.permute.xlu0 0
    %16 = vperm.xlu0 %15, %v12
    %v17 = vpop.permute.xlu0 %16
    %vm18 = vcmp.eq.s32.totalorder %v14, %v17
    %v19 = vsel %vm18, 1, 0
    %v20 = vcvt.s32.f32 %v19
    %v21 = vld [vmem:[%s1] sm:$0xff]
    %v22 = vld [vmem:[%s1 + $0x8] sm:$0xff]
    %v23 = vld [vmem:[%s1 + $0x10] sm:$0xff]
    %v24 = vld [vmem:[%s1 + $0x18] sm:$0xff]
    %v25 = vld [vmem:[%s1 + $0x20] sm:$0xff]
    %v26 = vld [vmem:[%s1 + $0x28] sm:$0xff]
    %v27 = vld [vmem:[%s1 + $0x30] sm:$0xff]
    %v28 = vld [vmem:[%s1 + $0x38] sm:$0xff]
    %v29 = vld [vmem:[%s1 + $0x40] sm:$0xff]
    %v30 = vld [vmem:[%s1 + $0x48] sm:$0xff]
    %v31 = vld [vmem:[%s1 + $0x50] sm:$0xff]
    %v32 = vld [vmem:[%s1 + $0x58] sm:$0xff]
    %v33 = vld [vmem:[%s1 + $0x60] sm:$0xff]
    %v34 = vld [vmem:[%s1 + $0x68] sm:$0xff]
    %v35 = vld [vmem:[%s1 + $0x70] sm:$0xff]
    %v36 = vld [vmem:[%s1 + $0x78] sm:$0xff]
    %37 = vmatprep.subr.mxu0 0.0
    %38 = vmatpush1.msra.mxu0 %v21
    %39 = vmatprep.subr.mxu0 0.0
    %40 = vmatpush1.msra.mxu0 %v22
    %41 = vmatprep.subr.mxu0 0.0
    %42 = vmatpush1.msra.mxu0 %v23
    %43 = vmatprep.subr.mxu0 0.0
    %44 = vmatpush1.msra.mxu0 %v24
    %45 = vmatprep.subr.mxu0 0.0
    %46 = vmatpush1.msra.mxu0 %v25
    %47 = vmatprep.subr.mxu0 0.0
    %48 = vmatpush1.msra.mxu0 %v26
    %49 = vmatprep.subr.mxu0 0.0
    %50 = vmatpush1.msra.mxu0 %v27
    %51 = vmatprep.subr.mxu0 0.0
    %52 = vmatpush1.msra.mxu0 %v28
    %53 = vmatprep.subr.mxu0 0.0
    %54 = vmatpush1.msra.mxu0 %v29
    %55 = vmatprep.subr.mxu0 0.0
    %56 = vmatpush1.msra.mxu0 %v30
    %57 = vmatprep.subr.mxu0 0.0
    %58 = vmatpush1.msra.mxu0 %v31
    %59 = vmatprep.subr.mxu0 0.0
    %60 = vmatpush1.msra.mxu0 %v32
    %61 = vmatprep.subr.mxu0 0.0
    %62 = vmatpush1.msra.mxu0 %v33
    %63 = vmatprep.subr.mxu0 0.0
    %64 = vmatpush1.msra.mxu0 %v34
    %65 = vmatprep.subr.mxu0 0.0
    %66 = vmatpush1.msra.mxu0 %v35
    %67 = vmatprep.subr.mxu0 0.0
    %68 = vmatpush1.msra.mxu0 %v36
    %69 = vmatprep.subr.mxu0 0.0
    %70 = vmatpush1.msra.mxu0 0.0
    %71 = vmatprep.subr.mxu0 0.0
    %72 = vmatpush1.msra.mxu0 0.0
    %73 = vmatprep.subr.mxu0 0.0
    %74 = vmatpush1.msra.mxu0 0.0
    %75 = vmatprep.subr.mxu0 0.0
    %76 = vmatpush1.msra.mxu0 0.0
    %77 = vmatprep.subr.mxu0 0.0
    %78 = vmatpush1.msra.mxu0 0.0
    %79 = vmatprep.subr.mxu0 0.0
    %80 = vmatpush1.msra.mxu0 0.0
    %81 = vmatprep.subr.mxu0 0.0
    %82 = vmatpush1.msra.mxu0 0.0
    %83 = vmatprep.subr.mxu0 0.0
    %84 = vmatpush1.msra.mxu0 0.0
    %85 = vmatprep.subr.mxu0 0.0
    %86 = vmatpush1.msra.mxu0 0.0
    %87 = vmatprep.subr.mxu0 0.0
    %88 = vmatpush1.msra.mxu0 0.0
    %89 = vmatprep.subr.mxu0 0.0
    %90 = vmatpush1.msra.mxu0 0.0
    %91 = vmatprep.subr.mxu0 0.0
    %92 = vmatpush1.msra.mxu0 0.0
    %93 = vmatprep.subr.mxu0 0.0
    %94 = vmatpush1.msra.mxu0 0.0
    %95 = vmatprep.subr.mxu0 0.0
    %96 = vmatpush1.msra.mxu0 0.0
    %97 = vmatprep.subr.mxu0 0.0
    %98 = vmatpush1.msra.mxu0 0.0
    %99 = vmatprep.subr.mxu0 0.0
    %100 = vmatpush1.msra.mxu0 0.0
    %101 = vmatprep.mubr.f32.mxu0 0.0
    %102 = vmatmul.mubr.f32.gmra.mrb[0].mxu0 %v20
    %v103 = vpop.f32.mrb[0].mxu0
    %v104 = vadd.f32 0.0, %v103
    %v105 = vpop.f32.mrb[0].mxu0
    %106 = vdwg.mxu0
    %vm107 = vcmask 261120
    %108 = vst.msk [vmem:[#allocation2] sm:$0xff] %vm107, %v104
    // Predicated region
    $region10: #{embedding_forward.1} parent=1 // pred_check
      _
    $region11: #{embedding_forward.1} parent=1 // pred_check_branch
      %110 = sbr.rel (0) target = $region13
    $region12: #{embedding_forward.1} parent=1 // pred_region
      %s112 = ssub.s32 128, 128
      %113 = vsyncadd [#allocation3], %s112
      %s115 = sshll.u32 [#allocation2], 4
      %s116 = int_to_ptr.vmem [resolvable:$true] %s115
      %118 = dma.vmem_to_hbm [thread:$0]  %s116, 128, %s2, [#allocation3]
    $region13: #{embedding_forward.1} parent=1 // pred_fallthru
      _
    // Predicated region
    $region14: #{embedding_forward.1} parent=1 // pred_check
      _
    $region15: #{embedding_forward.1} parent=1 // pred_check_branch
      %120 = sbr.rel (0) target = $region17
    $region16: #{embedding_forward.1} parent=1 // pred_region
      %121 = dma.done [#allocation3], 128
    $region17: #{embedding_forward.1} parent=1 // pred_fallthru
      _
    %122 = vsyncpa [#allocation3], 1

</llo_original>
